<compile_context>
chip_gen: v7x
topology: tpu7x:2x2x1
jax: 0.10.0
libtpu: 0.0.40
codegen_flags: <defaults>
</compile_context>

<pallas_src>
import jax
import jax.numpy as jnp
from jax.experimental import pallas as pl
from jax.experimental.pallas import tpu as pltpu
import numpy as np


def _rdnnc_kernel(x_ref, wx_ref, wy_ref, b_ref, w2_ref, b2_ref, out_ref, h_scratch):
    """Grid is (B,).  Each block sees x_ref=(1,S,H), out_ref=(S,O).

    Block 0: serial DNNC recurrence over the sequence of batch 0, then
             fc2 + sigmoid (one matmul, one contiguous store).
    Blocks >= 1: fc2 + sigmoid on the frozen input rows only.
    """
    bidx = pl.program_id(0)
    S, H = h_scratch.shape

    # bf16 operands, f32 accumulation on every dot.
    w2 = w2_ref[...].astype(jnp.bfloat16)          # (H, O)
    b2 = b2_ref[...]                               # (1, O) f32

    @pl.when(bidx == 0)
    def _():
        wx = wx_ref[...].astype(jnp.bfloat16)      # (H, H) stored as (in, out)
        wy = wy_ref[...].astype(jnp.bfloat16)      # (H, H)
        bias = b_ref[...]                          # (1, H) f32
        x0 = x_ref[0].astype(jnp.bfloat16)         # (S, H)

        # Hoisted input projection: one (S,H)@(H,H) matmul + one bias add.
        pre = jnp.dot(x0, wx, preferred_element_type=jnp.float32) + bias  # (S,H) f32

        # Serial recurrence, fully unrolled (S static).  Rows are written with
        # static indices into a tiny VMEM scratch -> no jnp.concatenate on the
        # critical path.
        # TODO(synk): pltpu.matmul_push_rhs/matmul_acc_lhs/matmul_pop could keep
        # Wy resident in MXU weight registers across the unrolled steps; skipped
        # because the 32x32 operand is far below the MXU tile and the explicit
        # MXU path is not robust at this size.
        y = jnp.zeros((1, H), jnp.bfloat16)
        for i in range(S):
            h = jnp.tanh(
                pre[i:i + 1, :]
                + jnp.dot(y, wy, preferred_element_type=jnp.float32)
            )                                                          # (1, H) f32
            h_scratch[i:i + 1, :] = h
            y = h.astype(jnp.bfloat16)

        feats = h_scratch[...].astype(jnp.bfloat16)                    # (S, H)
        out_ref[...] = jax.nn.sigmoid(
            jnp.dot(feats, w2, preferred_element_type=jnp.float32) + b2
        )

    @pl.when(bidx != 0)
    def _():
        feats = x_ref[0].astype(jnp.bfloat16)                          # (S, H)
        out_ref[...] = jax.nn.sigmoid(
            jnp.dot(feats, w2, preferred_element_type=jnp.float32) + b2
        )


@jax.jit
def recurrent_dnnc_forward(x, length, wx, wy, b, w2, b2):
    """x: (B, S, H) f32. Returns (B*S, O) f32. `length` is unused (as in torch)."""
    del length
    B, S, H = x.shape
    O = w2.shape[1]
    b2d = b.reshape(1, H)
    b22d = b2.reshape(1, O)

    # Advisory cost estimate: the kernel is latency-bound (serial recurrence),
    # give XLA honest numbers anyway.
    flops = 2 * S * H * H + 2 * S * H * H + 2 * (B * S) * H * O
    transcendentals = S * H + B * S * O
    bytes_accessed = 4 * (B * S * H + 2 * H * H + H + H * O + O + B * S * O)

    return pl.pallas_call(
        _rdnnc_kernel,
        out_shape=jax.ShapeDtypeStruct((B * S, O), jnp.float32),
        grid=(B,),
        in_specs=[
            pl.BlockSpec((1, S, H), lambda bi: (bi, 0, 0)),
            pl.BlockSpec((H, H), lambda bi: (0, 0)),
            pl.BlockSpec((H, H), lambda bi: (0, 0)),
            pl.BlockSpec((1, H), lambda bi: (0, 0)),
            pl.BlockSpec((H, O), lambda bi: (0, 0)),
            pl.BlockSpec((1, O), lambda bi: (0, 0)),
        ],
        out_specs=pl.BlockSpec((S, O), lambda bi: (bi, 0)),
        scratch_shapes=[pltpu.VMEM((S, H), jnp.float32)],
        compiler_params=pltpu.CompilerParams(
            dimension_semantics=("parallel",),
        ),
        cost_estimate=pl.CostEstimate(
            flops=flops,
            transcendentals=transcendentals,
            bytes_accessed=bytes_accessed,
        ),
    )(x, wx, wy, b2d, w2, b22d)


def _reference(x, wx, wy, b, w2, b2):
    """Pure-JAX f32 reference of the same semantics."""
    B, S, H = x.shape
    y = jnp.zeros((H,), jnp.float32)
    hs = []
    for i in range(S):
        h = jnp.tanh(x[0, i] @ wx + y @ wy + b)
        hs.append(h)
        y = h
    x1 = x.at[0].set(jnp.stack(hs, axis=0))
    out = jax.nn.sigmoid(x1 @ w2 + b2)
    return out.reshape(-1, w2.shape[1])


if __name__ == "__main__":
    # Small shapes consistent with the module: batch=2, seq=8, hidden=32, output=2.
    B, S, H, O = 2, 8, 32, 2

    key = jax.random.PRNGKey(0)
    kx, kwx, kwy, kb, kw2, kb2 = jax.random.split(key, 6)

    x = jax.random.normal(kx, (B, S, H), dtype=jnp.float32)
    length = jnp.full((B,), S, dtype=jnp.int32)

    # DNNC-cell parameters (synthetic, deterministic) — stored as (in, out).
    wx = jax.random.normal(kwx, (H, H), dtype=jnp.float32) * 0.1
    wy = jax.random.normal(kwy, (H, H), dtype=jnp.float32) * 0.1
    b = jax.random.normal(kb, (H,), dtype=jnp.float32) * 0.1

    # fc2: nn.Linear(hidden, output) — torch weight is (O, H); keep (H, O) = W^T.
    w2 = jax.random.normal(kw2, (H, O), dtype=jnp.float32) * 0.1
    b2 = jax.random.normal(kb2, (O,), dtype=jnp.float32) * 0.1

    out = recurrent_dnnc_forward(x, length, wx, wy, b, w2, b2)
    out = jax.block_until_ready(out)

    ref = _reference(x, wx, wy, b, w2, b2)
    assert out.shape == (B * S, O), out.shape
    # bf16 matmul operands with f32 accumulation -> tolerance loosened vs f32.
    np.testing.assert_allclose(np.asarray(out), np.asarray(ref), atol=1e-2, rtol=1e-2)

    print("KERNEL_OK")
</pallas_src>

<mosaic_0001>
module attributes {stable_mosaic.version = 11 : i64} {
  func.func @_rdnnc_kernel(%arg0: i32, %arg1: memref<1x8x32xf32, #tpu.memory_space<vmem>>, %arg2: memref<32x32xf32, #tpu.memory_space<vmem>>, %arg3: memref<32x32xf32, #tpu.memory_space<vmem>>, %arg4: memref<1x32xf32, #tpu.memory_space<vmem>>, %arg5: memref<32x2xf32, #tpu.memory_space<vmem>>, %arg6: memref<1x2xf32, #tpu.memory_space<vmem>>, %arg7: memref<8x2xf32, #tpu.memory_space<vmem>>, %arg8: memref<8x32xf32, #tpu.memory_space<vmem>>) attributes {dimension_semantics = [#tpu.dimension_semantics<parallel>], iteration_bounds = array<i64: 2>, scalar_prefetch = 0 : i64, scratch_operands = 1 : i64, tpu.core_type = #tpu.core_type<tc>, window_params = [{transform_indices = @transform_0, window_bounds = array<i64: 1, 8, 32>}, {pipeline_mode = #tpu.pipeline_mode<synchronous>, transform_indices = @transform_1, window_bounds = array<i64: 32, 32>}, {pipeline_mode = #tpu.pipeline_mode<synchronous>, transform_indices = @transform_2, window_bounds = array<i64: 32, 32>}, {pipeline_mode = #tpu.pipeline_mode<synchronous>, transform_indices = @transform_3, window_bounds = array<i64: 1, 32>}, {pipeline_mode = #tpu.pipeline_mode<synchronous>, transform_indices = @transform_4, window_bounds = array<i64: 32, 2>}, {pipeline_mode = #tpu.pipeline_mode<synchronous>, transform_indices = @transform_5, window_bounds = array<i64: 1, 2>}, {transform_indices = @transform_6, window_bounds = array<i64: 8, 2>}]} {
    %c0 = arith.constant 0 : index
    %c0_0 = arith.constant 0 : index
    %0 = vector.load %arg5[%c0, %c0_0] : memref<32x2xf32, #tpu.memory_space<vmem>>, vector<32x2xf32>
    %1 = arith.truncf %0 : vector<32x2xf32> to vector<32x2xbf16>
    %c0_1 = arith.constant 0 : index
    %c0_2 = arith.constant 0 : index
    %2 = vector.load %arg6[%c0_1, %c0_2] : memref<1x2xf32, #tpu.memory_space<vmem>>, vector<1x2xf32>
    %c0_i32 = arith.constant 0 : i32
    %3 = arith.cmpi eq, %arg0, %c0_i32 : i32
    %4 = arith.extui %3 : i1 to i32
    %c0_i32_3 = arith.constant 0 : i32
    %5 = arith.cmpi ne, %4, %c0_i32_3 : i32
    scf.if %5 {
      %c0_6 = arith.constant 0 : index
      %c0_7 = arith.constant 0 : index
      %9 = vector.load %arg2[%c0_6, %c0_7] : memref<32x32xf32, #tpu.memory_space<vmem>>, vector<32x32xf32>
      %10 = arith.truncf %9 : vector<32x32xf32> to vector<32x32xbf16>
      %c0_8 = arith.constant 0 : index
      %c0_9 = arith.constant 0 : index
      %11 = vector.load %arg3[%c0_8, %c0_9] : memref<32x32xf32, #tpu.memory_space<vmem>>, vector<32x32xf32>
      %12 = arith.truncf %11 : vector<32x32xf32> to vector<32x32xbf16>
      %c0_10 = arith.constant 0 : index
      %c0_11 = arith.constant 0 : index
      %13 = vector.load %arg4[%c0_10, %c0_11] : memref<1x32xf32, #tpu.memory_space<vmem>>, vector<1x32xf32>
      %c0_12 = arith.constant 0 : index
      %c0_13 = arith.constant 0 : index
      %c0_14 = arith.constant 0 : index
      %14 = vector.load %arg1[%c0_12, %c0_13, %c0_14] : memref<1x8x32xf32, #tpu.memory_space<vmem>>, vector<1x8x32xf32>
      %15 = vector.shape_cast %14 : vector<1x8x32xf32> to vector<8x32xf32>
      %16 = arith.truncf %15 : vector<8x32xf32> to vector<8x32xbf16>
      %cst = arith.constant dense<0.000000e+00> : vector<8x32xf32>
      %17 = tpu.matmul %16, %10, %cst {dimension_numbers = #tpu.dot_dimension_numbers<[1], [0], [0], [1], [0, 0, 1, 1], [], []>} : vector<8x32xbf16>, vector<32x32xbf16>, vector<8x32xf32> -> vector<8x32xf32>
      %18 = vector.broadcast %13 : vector<1x32xf32> to vector<8x32xf32>
      %19 = arith.addf %17, %18 : vector<8x32xf32>
      %cst_15 = arith.constant 0.000000e+00 : bf16
      %20 = vector.broadcast %cst_15 : bf16 to vector<1x32xbf16>
      %21 = vector.extract_strided_slice %19 {offsets = [0, 0], sizes = [1, 32], strides = [1, 1]} : vector<8x32xf32> to vector<1x32xf32>
      %cst_16 = arith.constant dense<0.000000e+00> : vector<1x32xf32>
      %22 = tpu.matmul %20, %12, %cst_16 {dimension_numbers = #tpu.dot_dimension_numbers<[1], [0], [0], [1], [0, 0, 1, 1], [], []>} : vector<1x32xbf16>, vector<32x32xbf16>, vector<1x32xf32> -> vector<1x32xf32>
      %23 = arith.addf %21, %22 : vector<1x32xf32>
      %24 = math.tanh %23 : vector<1x32xf32>
      %c0_17 = arith.constant 0 : index
      %c0_18 = arith.constant 0 : index
      %25 = vector.load %arg8[%c0_17, %c0_18] : memref<8x32xf32, #tpu.memory_space<vmem>>, vector<1x32xf32>
      tpu.vector_store %arg8[%c0_17, %c0_18], %24 {strides = array<i32>} : memref<8x32xf32, #tpu.memory_space<vmem>>, vector<1x32xf32>,
      %26 = arith.truncf %24 : vector<1x32xf32> to vector<1x32xbf16>
      %27 = vector.extract_strided_slice %19 {offsets = [1, 0], sizes = [1, 32], strides = [1, 1]} : vector<8x32xf32> to vector<1x32xf32>
      %cst_19 = arith.constant dense<0.000000e+00> : vector<1x32xf32>
      %28 = tpu.matmul %26, %12, %cst_19 {dimension_numbers = #tpu.dot_dimension_numbers<[1], [0], [0], [1], [0, 0, 1, 1], [], []>} : vector<1x32xbf16>, vector<32x32xbf16>, vector<1x32xf32> -> vector<1x32xf32>
      %29 = arith.addf %27, %28 : vector<1x32xf32>
      %30 = math.tanh %29 : vector<1x32xf32>
      %c1 = arith.constant 1 : index
      %c0_20 = arith.constant 0 : index
      %31 = vector.load %arg8[%c1, %c0_20] : memref<8x32xf32, #tpu.memory_space<vmem>>, vector<1x32xf32>
      tpu.vector_store %arg8[%c1, %c0_20], %30 {strides = array<i32>} : memref<8x32xf32, #tpu.memory_space<vmem>>, vector<1x32xf32>,
      %32 = arith.truncf %30 : vector<1x32xf32> to vector<1x32xbf16>
      %33 = vector.extract_strided_slice %19 {offsets = [2, 0], sizes = [1, 32], strides = [1, 1]} : vector<8x32xf32> to vector<1x32xf32>
      %cst_21 = arith.constant dense<0.000000e+00> : vector<1x32xf32>
      %34 = tpu.matmul %32, %12, %cst_21 {dimension_numbers = #tpu.dot_dimension_numbers<[1], [0], [0], [1], [0, 0, 1, 1], [], []>} : vector<1x32xbf16>, vector<32x32xbf16>, vector<1x32xf32> -> vector<1x32xf32>
      %35 = arith.addf %33, %34 : vector<1x32xf32>
      %36 = math.tanh %35 : vector<1x32xf32>
      %c2 = arith.constant 2 : index
      %c0_22 = arith.constant 0 : index
      %37 = vector.load %arg8[%c2, %c0_22] : memref<8x32xf32, #tpu.memory_space<vmem>>, vector<1x32xf32>
      tpu.vector_store %arg8[%c2, %c0_22], %36 {strides = array<i32>} : memref<8x32xf32, #tpu.memory_space<vmem>>, vector<1x32xf32>,
      %38 = arith.truncf %36 : vector<1x32xf32> to vector<1x32xbf16>
      %39 = vector.extract_strided_slice %19 {offsets = [3, 0], sizes = [1, 32], strides = [1, 1]} : vector<8x32xf32> to vector<1x32xf32>
      %cst_23 = arith.constant dense<0.000000e+00> : vector<1x32xf32>
      %40 = tpu.matmul %38, %12, %cst_23 {dimension_numbers = #tpu.dot_dimension_numbers<[1], [0], [0], [1], [0, 0, 1, 1], [], []>} : vector<1x32xbf16>, vector<32x32xbf16>, vector<1x32xf32> -> vector<1x32xf32>
      %41 = arith.addf %39, %40 : vector<1x32xf32>
      %42 = math.tanh %41 : vector<1x32xf32>
      %c3 = arith.constant 3 : index
      %c0_24 = arith.constant 0 : index
      %43 = vector.load %arg8[%c3, %c0_24] : memref<8x32xf32, #tpu.memory_space<vmem>>, vector<1x32xf32>
      tpu.vector_store %arg8[%c3, %c0_24], %42 {strides = array<i32>} : memref<8x32xf32, #tpu.memory_space<vmem>>, vector<1x32xf32>,
      %44 = arith.truncf %42 : vector<1x32xf32> to vector<1x32xbf16>
      %45 = vector.extract_strided_slice %19 {offsets = [4, 0], sizes = [1, 32], strides = [1, 1]} : vector<8x32xf32> to vector<1x32xf32>
      %cst_25 = arith.constant dense<0.000000e+00> : vector<1x32xf32>
      %46 = tpu.matmul %44, %12, %cst_25 {dimension_numbers = #tpu.dot_dimension_numbers<[1], [0], [0], [1], [0, 0, 1, 1], [], []>} : vector<1x32xbf16>, vector<32x32xbf16>, vector<1x32xf32> -> vector<1x32xf32>
      %47 = arith.addf %45, %46 : vector<1x32xf32>
      %48 = math.tanh %47 : vector<1x32xf32>
      %c4 = arith.constant 4 : index
      %c0_26 = arith.constant 0 : index
      %49 = vector.load %arg8[%c4, %c0_26] : memref<8x32xf32, #tpu.memory_space<vmem>>, vector<1x32xf32>
      tpu.vector_store %arg8[%c4, %c0_26], %48 {strides = array<i32>} : memref<8x32xf32, #tpu.memory_space<vmem>>, vector<1x32xf32>,
      %50 = arith.truncf %48 : vector<1x32xf32> to vector<1x32xbf16>
      %51 = vector.extract_strided_slice %19 {offsets = [5, 0], sizes = [1, 32], strides = [1, 1]} : vector<8x32xf32> to vector<1x32xf32>
      %cst_27 = arith.constant dense<0.000000e+00> : vector<1x32xf32>
      %52 = tpu.matmul %50, %12, %cst_27 {dimension_numbers = #tpu.dot_dimension_numbers<[1], [0], [0], [1], [0, 0, 1, 1], [], []>} : vector<1x32xbf16>, vector<32x32xbf16>, vector<1x32xf32> -> vector<1x32xf32>
      %53 = arith.addf %51, %52 : vector<1x32xf32>
      %54 = math.tanh %53 : vector<1x32xf32>
      %c5 = arith.constant 5 : index
      %c0_28 = arith.constant 0 : index
      %55 = vector.load %arg8[%c5, %c0_28] : memref<8x32xf32, #tpu.memory_space<vmem>>, vector<1x32xf32>
      tpu.vector_store %arg8[%c5, %c0_28], %54 {strides = array<i32>} : memref<8x32xf32, #tpu.memory_space<vmem>>, vector<1x32xf32>,
      %56 = arith.truncf %54 : vector<1x32xf32> to vector<1x32xbf16>
      %57 = vector.extract_strided_slice %19 {offsets = [6, 0], sizes = [1, 32], strides = [1, 1]} : vector<8x32xf32> to vector<1x32xf32>
      %cst_29 = arith.constant dense<0.000000e+00> : vector<1x32xf32>
      %58 = tpu.matmul %56, %12, %cst_29 {dimension_numbers = #tpu.dot_dimension_numbers<[1], [0], [0], [1], [0, 0, 1, 1], [], []>} : vector<1x32xbf16>, vector<32x32xbf16>, vector<1x32xf32> -> vector<1x32xf32>
      %59 = arith.addf %57, %58 : vector<1x32xf32>
      %60 = math.tanh %59 : vector<1x32xf32>
      %c6 = arith.constant 6 : index
      %c0_30 = arith.constant 0 : index
      %61 = vector.load %arg8[%c6, %c0_30] : memref<8x32xf32, #tpu.memory_space<vmem>>, vector<1x32xf32>
      tpu.vector_store %arg8[%c6, %c0_30], %60 {strides = array<i32>} : memref<8x32xf32, #tpu.memory_space<vmem>>, vector<1x32xf32>,
      %62 = arith.truncf %60 : vector<1x32xf32> to vector<1x32xbf16>
      %63 = vector.extract_strided_slice %19 {offsets = [7, 0], sizes = [1, 32], strides = [1, 1]} : vector<8x32xf32> to vector<1x32xf32>
      %cst_31 = arith.constant dense<0.000000e+00> : vector<1x32xf32>
      %64 = tpu.matmul %62, %12, %cst_31 {dimension_numbers = #tpu.dot_dimension_numbers<[1], [0], [0], [1], [0, 0, 1, 1], [], []>} : vector<1x32xbf16>, vector<32x32xbf16>, vector<1x32xf32> -> vector<1x32xf32>
      %65 = arith.addf %63, %64 : vector<1x32xf32>
      %66 = math.tanh %65 : vector<1x32xf32>
      %c7 = arith.constant 7 : index
      %c0_32 = arith.constant 0 : index
      %67 = vector.load %arg8[%c7, %c0_32] : memref<8x32xf32, #tpu.memory_space<vmem>>, vector<1x32xf32>
      tpu.vector_store %arg8[%c7, %c0_32], %66 {strides = array<i32>} : memref<8x32xf32, #tpu.memory_space<vmem>>, vector<1x32xf32>,
      %c0_33 = arith.constant 0 : index
      %c0_34 = arith.constant 0 : index
      %68 = vector.load %arg8[%c0_33, %c0_34] : memref<8x32xf32, #tpu.memory_space<vmem>>, vector<8x32xf32>
      %69 = arith.truncf %68 : vector<8x32xf32> to vector<8x32xbf16>
      %cst_35 = arith.constant dense<0.000000e+00> : vector<8x2xf32>
      %70 = tpu.matmul %69, %1, %cst_35 {dimension_numbers = #tpu.dot_dimension_numbers<[1], [0], [0], [1], [0, 0, 1, 1], [], []>} : vector<8x32xbf16>, vector<32x2xbf16>, vector<8x2xf32> -> vector<8x2xf32>
      %71 = vector.broadcast %2 : vector<1x2xf32> to vector<8x2xf32>
      %72 = arith.addf %70, %71 : vector<8x2xf32>
      %73 = arith.negf %72 : vector<8x2xf32>
      %74 = math.exp %73 : vector<8x2xf32>
      %cst_36 = arith.constant 1.000000e+00 : f32
      %75 = vector.broadcast %cst_36 : f32 to vector<8x2xf32>
      %76 = arith.addf %75, %74 : vector<8x2xf32>
      %77 = arith.divf %75, %76 : vector<8x2xf32>
      %c0_37 = arith.constant 0 : index
      %c0_38 = arith.constant 0 : index
      %78 = vector.load %arg7[%c0_37, %c0_38] : memref<8x2xf32, #tpu.memory_space<vmem>>, vector<8x2xf32>
      tpu.vector_store %arg7[%c0_37, %c0_38], %77 {strides = array<i32>} : memref<8x2xf32, #tpu.memory_space<vmem>>, vector<8x2xf32>,
    } else {
    }
    %c0_i32_4 = arith.constant 0 : i32
    %6 = arith.cmpi ne, %arg0, %c0_i32_4 : i32
    %7 = arith.extui %6 : i1 to i32
    %c0_i32_5 = arith.constant 0 : i32
    %8 = arith.cmpi ne, %7, %c0_i32_5 : i32
    scf.if %8 {
      %c0_6 = arith.constant 0 : index
      %c0_7 = arith.constant 0 : index
      %c0_8 = arith.constant 0 : index
      %9 = vector.load %arg1[%c0_6, %c0_7, %c0_8] : memref<1x8x32xf32, #tpu.memory_space<vmem>>, vector<1x8x32xf32>
      %10 = vector.shape_cast %9 : vector<1x8x32xf32> to vector<8x32xf32>
      %11 = arith.truncf %10 : vector<8x32xf32> to vector<8x32xbf16>
      %cst = arith.constant dense<0.000000e+00> : vector<8x2xf32>
      %12 = tpu.matmul %11, %1, %cst {dimension_numbers = #tpu.dot_dimension_numbers<[1], [0], [0], [1], [0, 0, 1, 1], [], []>} : vector<8x32xbf16>, vector<32x2xbf16>, vector<8x2xf32> -> vector<8x2xf32>
      %13 = vector.broadcast %2 : vector<1x2xf32> to vector<8x2xf32>
      %14 = arith.addf %12, %13 : vector<8x2xf32>
      %15 = arith.negf %14 : vector<8x2xf32>
      %16 = math.exp %15 : vector<8x2xf32>
      %cst_9 = arith.constant 1.000000e+00 : f32
      %17 = vector.broadcast %cst_9 : f32 to vector<8x2xf32>
      %18 = arith.addf %17, %16 : vector<8x2xf32>
      %19 = arith.divf %17, %18 : vector<8x2xf32>
      %c0_10 = arith.constant 0 : index
      %c0_11 = arith.constant 0 : index
      %20 = vector.load %arg7[%c0_10, %c0_11] : memref<8x2xf32, #tpu.memory_space<vmem>>, vector<8x2xf32>
      tpu.vector_store %arg7[%c0_10, %c0_11], %19 {strides = array<i32>} : memref<8x2xf32, #tpu.memory_space<vmem>>, vector<8x2xf32>,
    } else {
    }
    return
  }
  func.func @transform_0(%arg0: i32) -> (i32, i32, i32) {
    %c0_i32 = arith.constant 0 : i32
    %c0_i32_0 = arith.constant 0 : i32
    %c0_i32_1 = arith.constant 0 : i32
    return %arg0, %c0_i32, %c0_i32_0 : i32, i32, i32
  }
  func.func @transform_1(%arg0: i32) -> (i32, i32) {
    %c0_i32 = arith.constant 0 : i32
    %c0_i32_0 = arith.constant 0 : i32
    %c0_i32_1 = arith.constant 0 : i32
    return %c0_i32, %c0_i32_0 : i32, i32
  }
  func.func @transform_2(%arg0: i32) -> (i32, i32) {
    %c0_i32 = arith.constant 0 : i32
    %c0_i32_0 = arith.constant 0 : i32
    %c0_i32_1 = arith.constant 0 : i32
    return %c0_i32, %c0_i32_0 : i32, i32
  }
  func.func @transform_3(%arg0: i32) -> (i32, i32) {
    %c0_i32 = arith.constant 0 : i32
    %c0_i32_0 = arith.constant 0 : i32
    %c0_i32_1 = arith.constant 0 : i32
    return %c0_i32, %c0_i32_0 : i32, i32
  }
  func.func @transform_4(%arg0: i32) -> (i32, i32) {
    %c0_i32 = arith.constant 0 : i32
    %c0_i32_0 = arith.constant 0 : i32
    %c0_i32_1 = arith.constant 0 : i32
    return %c0_i32, %c0_i32_0 : i32, i32
  }
  func.func @transform_5(%arg0: i32) -> (i32, i32) {
    %c0_i32 = arith.constant 0 : i32
    %c0_i32_0 = arith.constant 0 : i32
    %c0_i32_1 = arith.constant 0 : i32
    return %c0_i32, %c0_i32_0 : i32, i32
  }
  func.func @transform_6(%arg0: i32) -> (i32, i32) {
    %c0_i32 = arith.constant 0 : i32
    %c0_i32_0 = arith.constant 0 : i32
    return %arg0, %c0_i32 : i32, i32
  }
}

</mosaic_0001>

<llo_original>
// kernel: recurrent_dnnc_forward.1
$region0: #{recurrent_dnnc_forward.1}
  #allocation0 [shape = 'u32[]', space=smem, size = 0x4, offset = 0x4, fixed_abs, tag = 'smem constant byte address 0x4 - core index']
  #allocation1 [shape = 'u32[144,128]{1,0:T(1,128)}', space=vmem, size = 0x12000, scoped, tag = 'internal scratch']
  #allocation2 [shape = 'f32[8,32]{1,0:T(8,128)}', space=vmem, size = 0x1000, scoped, tag = 'scratch operand']
  %s0 = inlined_call_operand.hbm [shape: f32[2,8,32], index: 0, kind: input, shape index: {}]
  %s1 = inlined_call_operand.vmem [shape: f32[32,32], index: 1, kind: input, shape index: {}]
  %s2 = inlined_call_operand.hbm [shape: f32[32,32], index: 2, kind: input, shape index: {}]
  %s3 = inlined_call_operand.vmem [shape: f32[1,32], index: 3, kind: input, shape index: {}]
  %s4 = inlined_call_operand.vmem [shape: f32[32,2], index: 4, kind: input, shape index: {}]
  %s5 = inlined_call_operand.vmem [shape: f32[1,2], index: 5, kind: input, shape index: {}]
  %s6 = inlined_call_operand.vmem [shape: f32[16,2], index: 6, kind: output, shape index: {}]
  %s7 = sld [smem:[#allocation0]]
  $region73: #{recurrent_dnnc_forward.1} parent=0
    _
  %s9 = ssub.s32 1, %s7
  %s10 = scalar_select 0, %s9, %s7
  $region1: #{recurrent_dnnc_forward.1} parent=0
    #allocation3 [shape = 'u8[8192]{0}', space=vmem, size = 0x2000, scoped, tag = 'input window, operand 0']
    #allocation4 [shape = 's32[2]{0}', space=sflag, size = 0x8, scoped, tag = 'scoped memory for recurrent_dnnc_forward.1']
    #allocation5 [shape = 'u8[16384]{0}', space=vmem, size = 0x4000, scoped, tag = 'input window, operand 2, single buffered']
    #allocation6 [shape = 's32[1]{0}', space=sflag, size = 0x4, scoped, tag = 'scoped memory for recurrent_dnnc_forward.1']
    %11 = vsyncpa [#allocation4], 0
    %s12 = scalar_lea.sflag [#allocation4], 1
    %13 = vsyncpa %s12, 0
    %14 = vsyncpa [#allocation6], 0
    loop: start=0, step=1, limit=4
    $region2: #{recurrent_dnnc_forward.1} parent=1 // loop_pre_header
      _
    $region3: #{recurrent_dnnc_forward.1} parent=1 // loop_header
      %s16 = sphi 0, %s20
      %p17 = scmp.ge.s32.totalorder %s16, 4
      %s26 = sphi 0, %s28
      %s29 = sphi 0, %s26
      %s30 = sphi 0, %s29
      %s46 = sphi 0, %s30
      %s50 = sphi 0, %s50
      %s52 = sphi 0, %s50
      %s53 = sphi 0, %s52
      %s67 = sphi 0, %s53
      %s71 = sphi 0, %s71
      %s73 = sphi 0, %s71
      %s74 = sphi 0, %s73
      %s88 = sphi 0, %s74
      %s92 = sphi 0, %s92
      %s94 = sphi 0, %s92
      %s95 = sphi 0, %s94
      %s109 = sphi 0, %s95
      %s113 = sphi 0, %s113
      %s115 = sphi 0, %s113
      %s116 = sphi 0, %s115
      %s130 = sphi 0, %s116
      %s134 = sphi 0, %s134
      %s136 = sphi 0, %s134
      %s137 = sphi 0, %s136
      %s151 = sphi 0, %s137
      %s157 = sphi 0, %s159
      %s160 = sphi 0, %s157
      %s161 = sphi 0, %s160
      %s177 = sphi 0, %s161
    $region4: #{recurrent_dnnc_forward.1} parent=1 // loop_header_branch
      %19 = sbr.rel (%p17) target = $region8
    $region5: #{recurrent_dnnc_forward.1} parent=1 // loop_body
      %s21 = ssub.s32 %s16, 1
      %s22 = ssub.s32 %s16, 2
      %s23 = sadd.s32 %s16, 1
      %s24 = ssub.s32 %s16, %s23
      %p25 = scmp.eq.s32.totalorder %s24, 0
      %s27 = sadd.s32 %s26, 1
      %s28 = scalar_select %p25, %s26, %s27
      %p31 = pneg %p25
      %p32 = scmp.eq.s32.totalorder %s16, 1
      %p33 = por %p31, %p32
      %p34 = scmp.ne.s32.totalorder %s26, %s29
      %p35 = scmp.eq.s32.totalorder %s16, 0
      %p36 = por %p34, %p35
      %p37 = scmp.ne.s32.totalorder %s26, %s29
      %p38 = scmp.eq.s32.totalorder %s21, 1
      %p39 = por %p37, %p38
      %p40 = scmp.ne.s32.totalorder %s29, %s30
      %p41 = scmp.eq.s32.totalorder %s21, 0
      %p42 = por %p40, %p41
      %p43 = scmp.ne.s32.totalorder %s29, %s30
      %p44 = scmp.eq.s32.totalorder %s22, 1
      %p45 = por %p43, %p44
      %p47 = scmp.ne.s32.totalorder %s30, %s46
      %p48 = scmp.eq.s32.totalorder %s22, 0
      %p49 = por %p47, %p48
      %s51 = sadd.s32 %s50, 1
      %p54 = scmp.eq.s32.totalorder %s16, 1
      %p55 = scmp.ne.s32.totalorder %s50, %s52
      %p56 = scmp.eq.s32.totalorder %s16, 0
      %p57 = por %p55, %p56
      %p58 = scmp.ne.s32.totalorder %s50, %s52
      %p59 = scmp.eq.s32.totalorder %s21, 1
      %p60 = por %p58, %p59
      %p61 = scmp.ne.s32.totalorder %s52, %s53
      %p62 = scmp.eq.s32.totalorder %s21, 0
      %p63 = por %p61, %p62
      %p64 = scmp.ne.s32.totalorder %s52, %s53
      %p65 = scmp.eq.s32.totalorder %s22, 1
      %p66 = por %p64, %p65
      %p68 = scmp.ne.s32.totalorder %s53, %s67
      %p69 = scmp.eq.s32.totalorder %s22, 0
      %p70 = por %p68, %p69
      %s72 = sadd.s32 %s71, 1
      %p75 = scmp.eq.s32.totalorder %s16, 1
      %p76 = scmp.ne.s32.totalorder %s71, %s73
      %p77 = scmp.eq.s32.totalorder %s16, 0
      %p78 = por %p76, %p77
      %p79 = scmp.ne.s32.totalorder %s71, %s73
      %p80 = scmp.eq.s32.totalorder %s21, 1
      %p81 = por %p79, %p80
      %p82 = scmp.ne.s32.totalorder %s73, %s74
      %p83 = scmp.eq.s32.totalorder %s21, 0
      %p84 = por %p82, %p83
      %p85 = scmp.ne.s32.totalorder %s73, %s74
      %p86 = scmp.eq.s32.totalorder %s22, 1
      %p87 = por %p85, %p86
      %p89 = scmp.ne.s32.totalorder %s74, %s88
      %p90 = scmp.eq.s32.totalorder %s22, 0
      %p91 = por %p89, %p90
      %s93 = sadd.s32 %s92, 1
      %p96 = scmp.eq.s32.totalorder %s16, 1
      %p97 = scmp.ne.s32.totalorder %s92, %s94
      %p98 = scmp.eq.s32.totalorder %s16, 0
      %p99 = por %p97, %p98
      %p100 = scmp.ne.s32.totalorder %s92, %s94
      %p101 = scmp.eq.s32.totalorder %s21, 1
      %p102 = por %p100, %p101
      %p103 = scmp.ne.s32.totalorder %s94, %s95
      %p104 = scmp.eq.s32.totalorder %s21, 0
      %p105 = por %p103, %p104
      %p106 = scmp.ne.s32.totalorder %s94, %s95
      %p107 = scmp.eq.s32.totalorder %s22, 1
      %p108 = por %p106, %p107
      %p110 = scmp.ne.s32.totalorder %s95, %s109
      %p111 = scmp.eq.s32.totalorder %s22, 0
      %p112 = por %p110, %p111
      %s114 = sadd.s32 %s113, 1
      %p117 = scmp.eq.s32.totalorder %s16, 1
      %p118 = scmp.ne.s32.totalorder %s113, %s115
      %p119 = scmp.eq.s32.totalorder %s16, 0
      %p120 = por %p118, %p119
      %p121 = scmp.ne.s32.totalorder %s113, %s115
      %p122 = scmp.eq.s32.totalorder %s21, 1
      %p123 = por %p121, %p122
      %p124 = scmp.ne.s32.totalorder %s115, %s116
      %p125 = scmp.eq.s32.totalorder %s21, 0
      %p126 = por %p124, %p125
      %p127 = scmp.ne.s32.totalorder %s115, %s116
      %p128 = scmp.eq.s32.totalorder %s22, 1
      %p129 = por %p127, %p128
      %p131 = scmp.ne.s32.totalorder %s116, %s130
      %p132 = scmp.eq.s32.totalorder %s22, 0
      %p133 = por %p131, %p132
      %s135 = sadd.s32 %s134, 1
      %p138 = scmp.eq.s32.totalorder %s16, 1
      %p139 = scmp.ne.s32.totalorder %s134, %s136
      %p140 = scmp.eq.s32.totalorder %s16, 0
      %p141 = por %p139, %p140
      %p142 = scmp.ne.s32.totalorder %s134, %s136
      %p143 = scmp.eq.s32.totalorder %s21, 1
      %p144 = por %p142, %p143
      %p145 = scmp.ne.s32.totalorder %s136, %s137
      %p146 = scmp.eq.s32.totalorder %s21, 0
      %p147 = por %p145, %p146
      %p148 = scmp.ne.s32.totalorder %s136, %s137
      %p149 = scmp.eq.s32.totalorder %s22, 1
      %p150 = por %p148, %p149
      %p152 = scmp.ne.s32.totalorder %s137, %s151
      %p153 = scmp.eq.s32.totalorder %s22, 0
      %p154 = por %p152, %p153
      %s155 = ssub.s32 %s16, %s23
      %p156 = scmp.eq.s32.totalorder %s155, 0
      %s158 = sadd.s32 %s157, 1
      %s159 = scalar_select %p156, %s157, %s158
      %p162 = pneg %p156
      %p163 = scmp.eq.s32.totalorder %s16, 1
      %p164 = por %p162, %p163
      %p165 = scmp.ne.s32.totalorder %s157, %s160
      %p166 = scmp.eq.s32.totalorder %s16, 0
      %p167 = por %p165, %p166
      %p168 = scmp.ne.s32.totalorder %s157, %s160
      %p169 = scmp.eq.s32.totalorder %s21, 1
      %p170 = por %p168, %p169
      %p171 = scmp.ne.s32.totalorder %s160, %s161
      %p172 = scmp.eq.s32.totalorder %s21, 0
      %p173 = por %p171, %p172
      %p174 = scmp.ne.s32.totalorder %s160, %s161
      %p175 = scmp.eq.s32.totalorder %s22, 1
      %p176 = por %p174, %p175
      %p178 = scmp.ne.s32.totalorder %s161, %s177
      %p179 = scmp.eq.s32.totalorder %s22, 0
      %p180 = por %p178, %p179
      %p181 = scmp.le.s32.totalorder 1, %s16
      %p182 = scmp.lt.s32.totalorder %s16, 3
      %p183 = pnand %p181, %p182
      %p184 = pneg %p183
      // Predicated region
      $region9: #{recurrent_dnnc_forward.1} parent=5 // pred_check
        _
      $region10: #{recurrent_dnnc_forward.1} parent=5 // pred_check_branch
        %186 = sbr.rel (%p183) target = $region12
      $region11: #{recurrent_dnnc_forward.1} parent=5 // pred_region
        %s187 = ssub.s32 %s16, 1
        // Predicated region
        $region13: #{recurrent_dnnc_forward.1} parent=11 // pred_check
          %p188 = pneg %p63
        $region14: #{recurrent_dnnc_forward.1} parent=11 // pred_check_branch
          %190 = sbr.rel (%p188) target = $region16
        $region15: #{recurrent_dnnc_forward.1} parent=11 // pred_region
          _
        $region16: #{recurrent_dnnc_forward.1} parent=11 // pred_fallthru
          _
        // Predicated region
        $region17: #{recurrent_dnnc_forward.1} parent=11 // pred_check
          %p191 = pneg %p84
        $region18: #{recurrent_dnnc_forward.1} parent=11 // pred_check_branch
          %193 = sbr.rel (%p191) target = $region20
        $region19: #{recurrent_dnnc_forward.1} parent=11 // pred_region
          %s195 = ssub.s32 512, 512
          %196 = vsyncadd [#allocation6], %s195
          %s197 = sshll.u32 [#allocation5], 4
          %s198 = int_to_ptr.vmem [resolvable:$true] %s197
          %203 = dma.hbm_to_vmem [thread:$0]  %s2, 512, %s198, [#allocation6], 128, 128, 8
        $region20: #{recurrent_dnnc_forward.1} parent=11 // pred_fallthru
          _
        // Predicated region
        $region21: #{recurrent_dnnc_forward.1} parent=11 // pred_check
          %p204 = pneg %p105
        $region22: #{recurrent_dnnc_forward.1} parent=11 // pred_check_branch
          %206 = sbr.rel (%p204) target = $region24
        $region23: #{recurrent_dnnc_forward.1} parent=11 // pred_region
          _
        $region24: #{recurrent_dnnc_forward.1} parent=11 // pred_fallthru
          _
        // Predicated region
        $region25: #{recurrent_dnnc_forward.1} parent=11 // pred_check
          %p207 = pneg %p126
        $region26: #{recurrent_dnnc_forward.1} parent=11 // pred_check_branch
          %209 = sbr.rel (%p207) target = $region28
        $region27: #{recurrent_dnnc_forward.1} parent=11 // pred_region
          _
        $region28: #{recurrent_dnnc_forward.1} parent=11 // pred_fallthru
          _
        // Predicated region
        $region29: #{recurrent_dnnc_forward.1} parent=11 // pred_check
          %p210 = pneg %p147
        $region30: #{recurrent_dnnc_forward.1} parent=11 // pred_check_branch
          %212 = sbr.rel (%p210) target = $region32
        $region31: #{recurrent_dnnc_forward.1} parent=11 // pred_region
          _
        $region32: #{recurrent_dnnc_forward.1} parent=11 // pred_fallthru
          _
      $region12: #{recurrent_dnnc_forward.1} parent=5 // pred_fallthru
        _
      %p213 = scmp.lt.s32.totalorder %s16, 2
      // Predicated region
      $region33: #{recurrent_dnnc_forward.1} parent=5 // pred_check
        %p214 = pneg %p213
      $region34: #{recurrent_dnnc_forward.1} parent=5 // pred_check_branch
        %216 = sbr.rel (%p214) target = $region36
      $region35: #{recurrent_dnnc_forward.1} parent=5 // pred_region
        // Predicated region
        $region37: #{recurrent_dnnc_forward.1} parent=35 // pred_check
          %p217 = pneg %p36
        $region38: #{recurrent_dnnc_forward.1} parent=35 // pred_check_branch
          %219 = sbr.rel (%p217) target = $region40
        $region39: #{recurrent_dnnc_forward.1} parent=35 // pred_region
          %s220 = sand.u32 %s26, 1
          %s221 = scalar_lea.sflag [#allocation4], %s220
          %s222 = sand.u32 %s26, 1
          %s223 = smul.addr %s222, 8
          %s224 = scalar_lea.vmem [#allocation3], %s223
          %s226 = ssub.s32 128, 128
          %227 = vsyncadd %s221, %s226
          %s228 = smul.addr %s16, 128
          %s229 = scalar_lea.hbm %s0, %s228
          %s231 = sshll.u32 %s224, 4
          %s232 = int_to_ptr.vmem [resolvable:$true] %s231
          %234 = dma.hbm_to_vmem [thread:$0]  %s229, 128, %s232, %s221
        $region40: #{recurrent_dnnc_forward.1} parent=35 // pred_fallthru
          _
      $region36: #{recurrent_dnnc_forward.1} parent=5 // pred_fallthru
        _
      %p235 = scmp.le.s32.totalorder 1, %s16
      %p236 = scmp.lt.s32.totalorder %s16, 3
      %p237 = pnand %p235, %p236
      %p238 = pneg %p237
      // Predicated region
      $region41: #{recurrent_dnnc_forward.1} parent=5 // pred_check
        _
      $region42: #{recurrent_dnnc_forward.1} parent=5 // pred_check_branch
        %240 = sbr.rel (%p237) target = $region44
      $region43: #{recurrent_dnnc_forward.1} parent=5 // pred_region
        %s241 = ssub.s32 %s16, 1
        %s242 = sand.u32 %s29, 1
        %s243 = scalar_lea.sflag [#allocation4], %s242
        %s244 = sand.u32 %s29, 1
        %s245 = smul.addr %s244, 8
        %s246 = scalar_lea.vmem [#allocation3], %s245
        // Predicated region
        $region45: #{recurrent_dnnc_forward.1} parent=43 // pred_check
          %p247 = pneg %p42
        $region46: #{recurrent_dnnc_forward.1} parent=43 // pred_check_branch
          %249 = sbr.rel (%p247) target = $region48
        $region47: #{recurrent_dnnc_forward.1} parent=43 // pred_region
          %250 = dma.done %s243, 128
        $region48: #{recurrent_dnnc_forward.1} parent=43 // pred_fallthru
          _
        // Predicated region
        $region49: #{recurrent_dnnc_forward.1} parent=43 // pred_check
          %p251 = pneg %p84
        $region50: #{recurrent_dnnc_forward.1} parent=43 // pred_check_branch
          %253 = sbr.rel (%p251) target = $region52
        $region51: #{recurrent_dnnc_forward.1} parent=43 // pred_region
          %254 = dma.done [#allocation6], 512
        $region52: #{recurrent_dnnc_forward.1} parent=43 // pred_fallthru
          _
        %s255 = sand.u32 %s29, 1
        %s256 = scalar_lea.sflag [#allocation4], %s255
        %s257 = sand.u32 %s29, 1
        %s258 = smul.addr %s257, 8
        %s259 = scalar_lea.vmem [#allocation3], %s258
        %p260 = pneg %p42
        %p261 = pneg %p39
        %p262 = pneg %p63
        %p263 = pneg %p60
        %p264 = pneg %p84
        %p265 = pneg %p81
        %p266 = pneg %p105
        %p267 = pneg %p102
        %p268 = pneg %p126
        %p269 = pneg %p123
        %p270 = pneg %p147
        %p271 = pneg %p144
        %p272 = pneg %p173
        %p273 = pneg %p170
        %p274 = scmp.lt.s32.totalorder %s21, 1
        %s275 = scalar_select %p274, %s21, 1
        %s276 = smul.addr %s275, 8
        %s277 = scalar_lea.vmem %s6, %s276
        %p278 = scmp.lt.s32.totalorder %s21, 1
        %s279 = scalar_select %p278, %s21, 1
        %s280 = smul.addr %s279, 8
        %s281 = scalar_lea.vmem %s6, %s280
        %v283 = vld [vmem:[%s4] sm:$0xff]
        %v284 = vld [vmem:[%s4 + $0x8] sm:$0xff]
        %v285 = vld [vmem:[%s4 + $0x10] sm:$0xff]
        %v286 = vld [vmem:[%s4 + $0x18] sm:$0xff]
        %v287 = vpack.c.bf16 %v284, %v283
        %v288 = vpack.c.bf16 %v286, %v285
        %v289 = vld [vmem:[%s5] sm:$0x1]
        %p290 = scmp.eq.s32.totalorder %s21, 0
        // Predicated region
        $region53: #{recurrent_dnnc_forward.1} parent=43 // pred_check
          %p291 = pneg %p290
        $region54: #{recurrent_dnnc_forward.1} parent=43 // pred_check_branch
          %293 = sbr.rel (%p291) target = $region56
        $region55: #{recurrent_dnnc_forward.1} parent=43 // pred_region
          %v294 = vld [vmem:[%s1] sm:$0xff]
          %v295 = vld [vmem:[%s1 + $0x8] sm:$0xff]
          %v296 = vld [vmem:[%s1 + $0x10] sm:$0xff]
          %v297 = vld [vmem:[%s1 + $0x18] sm:$0xff]
          %v298 = vpack.c.bf16 %v295, %v294
          %v299 = vpack.c.bf16 %v297, %v296
          %v300 = vld [vmem:[#allocation5] sm:$0xff]
          %v301 = vld [vmem:[#allocation5 + $0x8] sm:$0xff]
          %v302 = vld [vmem:[#allocation5 + $0x10] sm:$0xff]
          %v303 = vld [vmem:[#allocation5 + $0x18] sm:$0xff]
          %v304 = vpack.c.bf16 %v301, %v300
          %v305 = vpack.c.bf16 %v303, %v302
          %v306 = vld [vmem:[%s3] sm:$0x1]
          %v307 = vld [vmem:[%s246] sm:$0xff]
          %v308 = vpack.c.bf16 %v307, %v307
          %v310 = vlaneseq
          %v311 = vshrl.u32 %v310, 7
          %v312 = vsub.s32 0, %v311
          %v313 = vrot.slane %v306, %v312
          %vm315 = vcmask 261120
          %v317 = vsel %vm315, %v308, 0
          %319 = vmatprep.subr.bf16.mxu0 0
          %320 = vmatpush1.bf16.msra.mxu0 %v298
          %321 = vmatprep.subr.bf16.mxu0 0
          %322 = vmatpush1.bf16.msra.mxu0 %v299
          %323 = vmatprep.subr.bf16.mxu0 0
          %324 = vmatpush1.bf16.msra.mxu0 0
          %325 = vmatprep.subr.bf16.mxu0 0
          %326 = vmatpush1.bf16.msra.mxu0 0
          %327 = vmatprep.subr.bf16.mxu0 0
          %328 = vmatpush1.bf16.msra.mxu0 0
          %329 = vmatprep.subr.bf16.mxu0 0
          %330 = vmatpush1.bf16.msra.mxu0 0
          %331 = vmatprep.subr.bf16.mxu0 0
          %332 = vmatpush1.bf16.msra.mxu0 0
          %333 = vmatprep.subr.bf16.mxu0 0
          %334 = vmatpush1.bf16.msra.mxu0 0
          %335 = vmatprep.subr.bf16.mxu0 0
          %336 = vmatpush1.bf16.msra.mxu0 0
          %337 = vmatprep.subr.bf16.mxu0 0
          %338 = vmatpush1.bf16.msra.mxu0 0
          %339 = vmatprep.subr.bf16.mxu0 0
          %340 = vmatpush1.bf16.msra.mxu0 0
          %341 = vmatprep.subr.bf16.mxu0 0
          %342 = vmatpush1.bf16.msra.mxu0 0
          %343 = vmatprep.subr.bf16.mxu0 0
          %344 = vmatpush1.bf16.msra.mxu0 0
          %345 = vmatprep.subr.bf16.mxu0 0
          %346 = vmatpush1.bf16.msra.mxu0 0
          %347 = vmatprep.subr.bf16.mxu0 0
          %348 = vmatpush1.bf16.msra.mxu0 0
          %349 = vmatprep.subr.bf16.mxu0 0
          %350 = vmatpush1.bf16.msra.mxu0 0
          %351 = vmatprep.mubr.bf16.mxu0 0
          %352 = vmatmul.mubr.bf16.gmra.mrb[0].mxu0 %v317
          %v353 = vpop.f32.mrb[0].mxu0
          %v354 = vadd.f32 %v313, %v353
          %v355 = vpop.f32.mrb[0].mxu0
          %v356 = vpop.f32.mrb[0].mxu0
          %v357 = vpop.f32.mrb[0].mxu0
          %358 = vdwg.mxu0
          %v360 = vsel %vm315, 0, 0
          %362 = vmatprep.subr.bf16.mxu0 0
          %363 = vmatpush1.bf16.msra.mxu0 %v304
          %364 = vmatprep.subr.bf16.mxu0 0
          %365 = vmatpush1.bf16.msra.mxu0 %v305
          %366 = vmatprep.subr.bf16.mxu0 0
          %367 = vmatpush1.bf16.msra.mxu0 0
          %368 = vmatprep.subr.bf16.mxu0 0
          %369 = vmatpush1.bf16.msra.mxu0 0
          %370 = vmatprep.subr.bf16.mxu0 0
          %371 = vmatpush1.bf16.msra.mxu0 0
          %372 = vmatprep.subr.bf16.mxu0 0
          %373 = vmatpush1.bf16.msra.mxu0 0
          %374 = vmatprep.subr.bf16.mxu0 0
          %375 = vmatpush1.bf16.msra.mxu0 0
          %376 = vmatprep.subr.bf16.mxu0 0
          %377 = vmatpush1.bf16.msra.mxu0 0
          %378 = vmatprep.subr.bf16.mxu0 0
          %379 = vmatpush1.bf16.msra.mxu0 0
          %380 = vmatprep.subr.bf16.mxu0 0
          %381 = vmatpush1.bf16.msra.mxu0 0
          %382 = vmatprep.subr.bf16.mxu0 0
          %383 = vmatpush1.bf16.msra.mxu0 0
          %384 = vmatprep.subr.bf16.mxu0 0
          %385 = vmatpush1.bf16.msra.mxu0 0
          %386 = vmatprep.subr.bf16.mxu0 0
          %387 = vmatpush1.bf16.msra.mxu0 0
          %388 = vmatprep.subr.bf16.mxu0 0
          %389 = vmatpush1.bf16.msra.mxu0 0
          %390 = vmatprep.subr.bf16.mxu0 0
          %391 = vmatpush1.bf16.msra.mxu0 0
          %392 = vmatprep.subr.bf16.mxu0 0
          %393 = vmatpush1.bf16.msra.mxu0 0
          %394 = vmatprep.mubr.bf16.mxu0 0
          %395 = vmatmul.mubr.bf16.gmra.mrb[0].mxu0 %v360
          %v396 = vpop.f32.mrb[0].mxu0
          %v397 = vadd.f32 0.0, %v396
          %v398 = vpop.f32.mrb[0].mxu0
          %v399 = vpop.f32.mrb[0].mxu0
          %v400 = vpop.f32.mrb[0].mxu0
          %401 = vdwg.mxu0
          %v402 = vadd.f32 %v354, %v397
          %v403 = vtanh.pop %v402
          %vm404 = vcmask 253952
          %405 = vst.msk [vmem:[#allocation2] sm:$0x1] %vm404, %v403
          %v406 = vpack.c.bf16 %v403, %v403
          %v408 = vsel %vm315, %v406, 0
          %410 = vmatprep.subr.bf16.mxu0 0
          %411 = vmatpush1.bf16.msra.mxu0 %v304
          %412 = vmatprep.subr.bf16.mxu0 0
          %413 = vmatpush1.bf16.msra.mxu0 %v305
          %414 = vmatprep.subr.bf16.mxu0 0
          %415 = vmatpush1.bf16.msra.mxu0 0
          %416 = vmatprep.subr.bf16.mxu0 0
          %417 = vmatpush1.bf16.msra.mxu0 0
          %418 = vmatprep.subr.bf16.mxu0 0
          %419 = vmatpush1.bf16.msra.mxu0 0
          %420 = vmatprep.subr.bf16.mxu0 0
          %421 = vmatpush1.bf16.msra.mxu0 0
          %422 = vmatprep.subr.bf16.mxu0 0
          %423 = vmatpush1.bf16.msra.mxu0 0
          %424 = vmatprep.subr.bf16.mxu0 0
          %425 = vmatpush1.bf16.msra.mxu0 0
          %426 = vmatprep.subr.bf16.mxu0 0
          %427 = vmatpush1.bf16.msra.mxu0 0
          %428 = vmatprep.subr.bf16.mxu0 0
          %429 = vmatpush1.bf16.msra.mxu0 0
          %430 = vmatprep.subr.bf16.mxu0 0
          %431 = vmatpush1.bf16.msra.mxu0 0
          %432 = vmatprep.subr.bf16.mxu0 0
          %433 = vmatpush1.bf16.msra.mxu0 0
          %434 = vmatprep.subr.bf16.mxu0 0
          %435 = vmatpush1.bf16.msra.mxu0 0
          %436 = vmatprep.subr.bf16.mxu0 0
          %437 = vmatpush1.bf16.msra.mxu0 0
          %438 = vmatprep.subr.bf16.mxu0 0
          %439 = vmatpush1.bf16.msra.mxu0 0
          %440 = vmatprep.subr.bf16.mxu0 0
          %441 = vmatpush1.bf16.msra.mxu0 0
          %442 = vmatprep.mubr.bf16.mxu0 0
          %443 = vmatmul.mubr.bf16.gmra.mrb[0].mxu0 %v408
          %v444 = vpop.f32.mrb[0].mxu0
          %v445 = vadd.f32 0.0, %v444
          %v446 = vpop.f32.mrb[0].mxu0
          %v447 = vpop.f32.mrb[0].mxu0
          %v448 = vpop.f32.mrb[0].mxu0
          %449 = vdwg.mxu0
          %v451 = vrot.slane %v445, 7
          %v453 = vadd.f32 %v354, %v451
          %v454 = vtanh.pop %v453
          %vm455 = vcmask 254977
          %456 = vst.msk [vmem:[#allocation2] sm:$0x2] %vm455, %v454
          %v457 = vpack.c.bf16 %v454, %v454
          %v459 = vshrl.u32 %v457, 16
          %v462 = vsel %vm315, %v459, 0
          %464 = vmatprep.subr.bf16.mxu0 0
          %465 = vmatpush1.bf16.msra.mxu0 %v304
          %466 = vmatprep.subr.bf16.mxu0 0
          %467 = vmatpush1.bf16.msra.mxu0 %v305
          %468 = vmatprep.subr.bf16.mxu0 0
          %469 = vmatpush1.bf16.msra.mxu0 0
          %470 = vmatprep.subr.bf16.mxu0 0
          %471 = vmatpush1.bf16.msra.mxu0 0
          %472 = vmatprep.subr.bf16.mxu0 0
          %473 = vmatpush1.bf16.msra.mxu0 0
          %474 = vmatprep.subr.bf16.mxu0 0
          %475 = vmatpush1.bf16.msra.mxu0 0
          %476 = vmatprep.subr.bf16.mxu0 0
          %477 = vmatpush1.bf16.msra.mxu0 0
          %478 = vmatprep.subr.bf16.mxu0 0
          %479 = vmatpush1.bf16.msra.mxu0 0
          %480 = vmatprep.subr.bf16.mxu0 0
          %481 = vmatpush1.bf16.msra.mxu0 0
          %482 = vmatprep.subr.bf16.mxu0 0
          %483 = vmatpush1.bf16.msra.mxu0 0
          %484 = vmatprep.subr.bf16.mxu0 0
          %485 = vmatpush1.bf16.msra.mxu0 0
          %486 = vmatprep.subr.bf16.mxu0 0
          %487 = vmatpush1.bf16.msra.mxu0 0
          %488 = vmatprep.subr.bf16.mxu0 0
          %489 = vmatpush1.bf16.msra.mxu0 0
          %490 = vmatprep.subr.bf16.mxu0 0
          %491 = vmatpush1.bf16.msra.mxu0 0
          %492 = vmatprep.subr.bf16.mxu0 0
          %493 = vmatpush1.bf16.msra.mxu0 0
          %494 = vmatprep.subr.bf16.mxu0 0
          %495 = vmatpush1.bf16.msra.mxu0 0
          %496 = vmatprep.mubr.bf16.mxu0 0
          %497 = vmatmul.mubr.bf16.gmra.mrb[0].mxu0 %v462
          %v498 = vpop.f32.mrb[0].mxu0
          %v499 = vadd.f32 0.0, %v498
          %v500 = vpop.f32.mrb[0].mxu0
          %v501 = vpop.f32.mrb[0].mxu0
          %v502 = vpop.f32.mrb[0].mxu0
          %503 = vdwg.mxu0
          %v505 = vrot.slane %v499, 6
          %v507 = vadd.f32 %v354, %v505
          %v508 = vtanh.pop %v507
          %vm509 = vcmask 256002
          %510 = vst.msk [vmem:[#allocation2] sm:$0x4] %vm509, %v508
          %v511 = vpack.c.bf16 %v508, %v508
          %v513 = vrot.slane %v511, 1
          %v515 = vsel %vm315, %v513, 0
          %517 = vmatprep.subr.bf16.mxu0 0
          %518 = vmatpush1.bf16.msra.mxu0 %v304
          %519 = vmatprep.subr.bf16.mxu0 0
          %520 = vmatpush1.bf16.msra.mxu0 %v305
          %521 = vmatprep.subr.bf16.mxu0 0
          %522 = vmatpush1.bf16.msra.mxu0 0
          %523 = vmatprep.subr.bf16.mxu0 0
          %524 = vmatpush1.bf16.msra.mxu0 0
          %525 = vmatprep.subr.bf16.mxu0 0
          %526 = vmatpush1.bf16.msra.mxu0 0
          %527 = vmatprep.subr.bf16.mxu0 0
          %528 = vmatpush1.bf16.msra.mxu0 0
          %529 = vmatprep.subr.bf16.mxu0 0
          %530 = vmatpush1.bf16.msra.mxu0 0
          %531 = vmatprep.subr.bf16.mxu0 0
          %532 = vmatpush1.bf16.msra.mxu0 0
          %533 = vmatprep.subr.bf16.mxu0 0
          %534 = vmatpush1.bf16.msra.mxu0 0
          %535 = vmatprep.subr.bf16.mxu0 0
          %536 = vmatpush1.bf16.msra.mxu0 0
          %537 = vmatprep.subr.bf16.mxu0 0
          %538 = vmatpush1.bf16.msra.mxu0 0
          %539 = vmatprep.subr.bf16.mxu0 0
          %540 = vmatpush1.bf16.msra.mxu0 0
          %541 = vmatprep.subr.bf16.mxu0 0
          %542 = vmatpush1.bf16.msra.mxu0 0
          %543 = vmatprep.subr.bf16.mxu0 0
          %544 = vmatpush1.bf16.msra.mxu0 0
          %545 = vmatprep.subr.bf16.mxu0 0
          %546 = vmatpush1.bf16.msra.mxu0 0
          %547 = vmatprep.subr.bf16.mxu0 0
          %548 = vmatpush1.bf16.msra.mxu0 0
          %549 = vmatprep.mubr.bf16.mxu0 0
          %550 = vmatmul.mubr.bf16.gmra.mrb[0].mxu0 %v515
          %v551 = vpop.f32.mrb[0].mxu0
          %v552 = vadd.f32 0.0, %v551
          %v553 = vpop.f32.mrb[0].mxu0
          %v554 = vpop.f32.mrb[0].mxu0
          %v555 = vpop.f32.mrb[0].mxu0
          %556 = vdwg.mxu0
          %v558 = vrot.slane %v552, 5
          %v560 = vadd.f32 %v354, %v558
          %v561 = vtanh.pop %v560
          %vm562 = vcmask 257027
          %563 = vst.msk [vmem:[#allocation2] sm:$0x8] %vm562, %v561
          %v564 = vpack.c.bf16 %v561, %v561
          %v566 = vshrl.u32 %v564, 16
          %v568 = vrot.slane %v566, 1
          %v570 = vsel %vm315, %v568, 0
          %572 = vmatprep.subr.bf16.mxu0 0
          %573 = vmatpush1.bf16.msra.mxu0 %v304
          %574 = vmatprep.subr.bf16.mxu0 0
          %575 = vmatpush1.bf16.msra.mxu0 %v305
          %576 = vmatprep.subr.bf16.mxu0 0
          %577 = vmatpush1.bf16.msra.mxu0 0
          %578 = vmatprep.subr.bf16.mxu0 0
          %579 = vmatpush1.bf16.msra.mxu0 0
          %580 = vmatprep.subr.bf16.mxu0 0
          %581 = vmatpush1.bf16.msra.mxu0 0
          %582 = vmatprep.subr.bf16.mxu0 0
          %583 = vmatpush1.bf16.msra.mxu0 0
          %584 = vmatprep.subr.bf16.mxu0 0
          %585 = vmatpush1.bf16.msra.mxu0 0
          %586 = vmatprep.subr.bf16.mxu0 0
          %587 = vmatpush1.bf16.msra.mxu0 0
          %588 = vmatprep.subr.bf16.mxu0 0
          %589 = vmatpush1.bf16.msra.mxu0 0
          %590 = vmatprep.subr.bf16.mxu0 0
          %591 = vmatpush1.bf16.msra.mxu0 0
          %592 = vmatprep.subr.bf16.mxu0 0
          %593 = vmatpush1.bf16.msra.mxu0 0
          %594 = vmatprep.subr.bf16.mxu0 0
          %595 = vmatpush1.bf16.msra.mxu0 0
          %596 = vmatprep.subr.bf16.mxu0 0
          %597 = vmatpush1.bf16.msra.mxu0 0
          %598 = vmatprep.subr.bf16.mxu0 0
          %599 = vmatpush1.bf16.msra.mxu0 0
          %600 = vmatprep.subr.bf16.mxu0 0
          %601 = vmatpush1.bf16.msra.mxu0 0
          %602 = vmatprep.subr.bf16.mxu0 0
          %603 = vmatpush1.bf16.msra.mxu0 0
          %604 = vmatprep.mubr.bf16.mxu0 0
          %605 = vmatmul.mubr.bf16.gmra.mrb[0].mxu0 %v570
          %v606 = vpop.f32.mrb[0].mxu0
          %v607 = vadd.f32 0.0, %v606
          %v608 = vpop.f32.mrb[0].mxu0
          %v609 = vpop.f32.mrb[0].mxu0
          %v610 = vpop.f32.mrb[0].mxu0
          %611 = vdwg.mxu0
          %v613 = vrot.slane %v607, 4
          %v615 = vadd.f32 %v354, %v613
          %v616 = vtanh.pop %v615
          %vm617 = vcmask 258052
          %618 = vst.msk [vmem:[#allocation2] sm:$0x10] %vm617, %v616
          %v619 = vpack.c.bf16 %v616, %v616
          %v621 = vrot.slane %v619, 2
          %v623 = vsel %vm315, %v621, 0
          %625 = vmatprep.subr.bf16.mxu0 0
          %626 = vmatpush1.bf16.msra.mxu0 %v304
          %627 = vmatprep.subr.bf16.mxu0 0
          %628 = vmatpush1.bf16.msra.mxu0 %v305
          %629 = vmatprep.subr.bf16.mxu0 0
          %630 = vmatpush1.bf16.msra.mxu0 0
          %631 = vmatprep.subr.bf16.mxu0 0
          %632 = vmatpush1.bf16.msra.mxu0 0
          %633 = vmatprep.subr.bf16.mxu0 0
          %634 = vmatpush1.bf16.msra.mxu0 0
          %635 = vmatprep.subr.bf16.mxu0 0
          %636 = vmatpush1.bf16.msra.mxu0 0
          %637 = vmatprep.subr.bf16.mxu0 0
          %638 = vmatpush1.bf16.msra.mxu0 0
          %639 = vmatprep.subr.bf16.mxu0 0
          %640 = vmatpush1.bf16.msra.mxu0 0
          %641 = vmatprep.subr.bf16.mxu0 0
          %642 = vmatpush1.bf16.msra.mxu0 0
          %643 = vmatprep.subr.bf16.mxu0 0
          %644 = vmatpush1.bf16.msra.mxu0 0
          %645 = vmatprep.subr.bf16.mxu0 0
          %646 = vmatpush1.bf16.msra.mxu0 0
          %647 = vmatprep.subr.bf16.mxu0 0
          %648 = vmatpush1.bf16.msra.mxu0 0
          %649 = vmatprep.subr.bf16.mxu0 0
          %650 = vmatpush1.bf16.msra.mxu0 0
          %651 = vmatprep.subr.bf16.mxu0 0
          %652 = vmatpush1.bf16.msra.mxu0 0
          %653 = vmatprep.subr.bf16.mxu0 0
          %654 = vmatpush1.bf16.msra.mxu0 0
          %655 = vmatprep.subr.bf16.mxu0 0
          %656 = vmatpush1.bf16.msra.mxu0 0
          %657 = vmatprep.mubr.bf16.mxu0 0
          %658 = vmatmul.mubr.bf16.gmra.mrb[0].mxu0 %v623
          %v659 = vpop.f32.mrb[0].mxu0
          %v660 = vadd.f32 0.0, %v659
          %v661 = vpop.f32.mrb[0].mxu0
          %v662 = vpop.f32.mrb[0].mxu0
          %v663 = vpop.f32.mrb[0].mxu0
          %664 = vdwg.mxu0
          %v666 = vrot.slane %v660, 3
          %v668 = vadd.f32 %v354, %v666
          %v669 = vtanh.pop %v668
          %vm670 = vcmask 259077
          %671 = vst.msk [vmem:[#allocation2] sm:$0x20] %vm670, %v669
          %v672 = vpack.c.bf16 %v669, %v669
          %v674 = vshrl.u32 %v672, 16
          %v676 = vrot.slane %v674, 2
          %v678 = vsel %vm315, %v676, 0
          %680 = vmatprep.subr.bf16.mxu0 0
          %681 = vmatpush1.bf16.msra.mxu0 %v304
          %682 = vmatprep.subr.bf16.mxu0 0
          %683 = vmatpush1.bf16.msra.mxu0 %v305
          %684 = vmatprep.subr.bf16.mxu0 0
          %685 = vmatpush1.bf16.msra.mxu0 0
          %686 = vmatprep.subr.bf16.mxu0 0
          %687 = vmatpush1.bf16.msra.mxu0 0
          %688 = vmatprep.subr.bf16.mxu0 0
          %689 = vmatpush1.bf16.msra.mxu0 0
          %690 = vmatprep.subr.bf16.mxu0 0
          %691 = vmatpush1.bf16.msra.mxu0 0
          %692 = vmatprep.subr.bf16.mxu0 0
          %693 = vmatpush1.bf16.msra.mxu0 0
          %694 = vmatprep.subr.bf16.mxu0 0
          %695 = vmatpush1.bf16.msra.mxu0 0
          %696 = vmatprep.subr.bf16.mxu0 0
          %697 = vmatpush1.bf16.msra.mxu0 0
          %698 = vmatprep.subr.bf16.mxu0 0
          %699 = vmatpush1.bf16.msra.mxu0 0
          %700 = vmatprep.subr.bf16.mxu0 0
          %701 = vmatpush1.bf16.msra.mxu0 0
          %702 = vmatprep.subr.bf16.mxu0 0
          %703 = vmatpush1.bf16.msra.mxu0 0
          %704 = vmatprep.subr.bf16.mxu0 0
          %705 = vmatpush1.bf16.msra.mxu0 0
          %706 = vmatprep.subr.bf16.mxu0 0
          %707 = vmatpush1.bf16.msra.mxu0 0
          %708 = vmatprep.subr.bf16.mxu0 0
          %709 = vmatpush1.bf16.msra.mxu0 0
          %710 = vmatprep.subr.bf16.mxu0 0
          %711 = vmatpush1.bf16.msra.mxu0 0
          %712 = vmatprep.mubr.bf16.mxu0 0
          %713 = vmatmul.mubr.bf16.gmra.mrb[0].mxu0 %v678
          %v714 = vpop.f32.mrb[0].mxu0
          %v715 = vadd.f32 0.0, %v714
          %v716 = vpop.f32.mrb[0].mxu0
          %v717 = vpop.f32.mrb[0].mxu0
          %v718 = vpop.f32.mrb[0].mxu0
          %719 = vdwg.mxu0
          %v721 = vrot.slane %v715, 2
          %v723 = vadd.f32 %v354, %v721
          %v724 = vtanh.pop %v723
          %vm725 = vcmask 260102
          %726 = vst.msk [vmem:[#allocation2] sm:$0x40] %vm725, %v724
          %v727 = vpack.c.bf16 %v724, %v724
          %v729 = vrot.slane %v727, 3
          %v731 = vsel %vm315, %v729, 0
          %733 = vmatprep.subr.bf16.mxu0 0
          %734 = vmatpush1.bf16.msra.mxu0 %v304
          %735 = vmatprep.subr.bf16.mxu0 0
          %736 = vmatpush1.bf16.msra.mxu0 %v305
          %737 = vmatprep.subr.bf16.mxu0 0
          %738 = vmatpush1.bf16.msra.mxu0 0
          %739 = vmatprep.subr.bf16.mxu0 0
          %740 = vmatpush1.bf16.msra.mxu0 0
          %741 = vmatprep.subr.bf16.mxu0 0
          %742 = vmatpush1.bf16.msra.mxu0 0
          %743 = vmatprep.subr.bf16.mxu0 0
          %744 = vmatpush1.bf16.msra.mxu0 0
          %745 = vmatprep.subr.bf16.mxu0 0
          %746 = vmatpush1.bf16.msra.mxu0 0
          %747 = vmatprep.subr.bf16.mxu0 0
          %748 = vmatpush1.bf16.msra.mxu0 0
          %749 = vmatprep.subr.bf16.mxu0 0
          %750 = vmatpush1.bf16.msra.mxu0 0
          %751 = vmatprep.subr.bf16.mxu0 0
          %752 = vmatpush1.bf16.msra.mxu0 0
          %753 = vmatprep.subr.bf16.mxu0 0
          %754 = vmatpush1.bf16.msra.mxu0 0
          %755 = vmatprep.subr.bf16.mxu0 0
          %756 = vmatpush1.bf16.msra.mxu0 0
          %757 = vmatprep.subr.bf16.mxu0 0
          %758 = vmatpush1.bf16.msra.mxu0 0
          %759 = vmatprep.subr.bf16.mxu0 0
          %760 = vmatpush1.bf16.msra.mxu0 0
          %761 = vmatprep.subr.bf16.mxu0 0
          %762 = vmatpush1.bf16.msra.mxu0 0
          %763 = vmatprep.subr.bf16.mxu0 0
          %764 = vmatpush1.bf16.msra.mxu0 0
          %765 = vmatprep.mubr.bf16.mxu0 0
          %766 = vmatmul.mubr.bf16.gmra.mrb[0].mxu0 %v731
          %v767 = vpop.f32.mrb[0].mxu0
          %v768 = vadd.f32 0.0, %v767
          %v769 = vpop.f32.mrb[0].mxu0
          %v770 = vpop.f32.mrb[0].mxu0
          %v771 = vpop.f32.mrb[0].mxu0
          %772 = vdwg.mxu0
          %v774 = vrot.slane %v768, 1
          %v776 = vadd.f32 %v354, %v774
          %v777 = vtanh.pop %v776
          %vm778 = vcmask 261127
          %779 = vst.msk [vmem:[#allocation2] sm:$0x80] %vm778, %v777
          %v780 = vld [vmem:[#allocation2] sm:$0xff]
          %v781 = vpack.c.bf16 %v780, %v780
          %v783 = vlaneseq
          %v784 = vshrl.u32 %v783, 7
          %v785 = vsub.s32 0, %v784
          %v786 = vrot.slane %v289, %v785
          %v789 = vsel %vm315, %v781, 0
          %791 = vmatprep.subr.bf16.mxu0 0
          %792 = vmatpush1.bf16.msra.mxu0 %v287
          %793 = vmatprep.subr.bf16.mxu0 0
          %794 = vmatpush1.bf16.msra.mxu0 %v288
          %795 = vmatprep.subr.bf16.mxu0 0
          %796 = vmatpush1.bf16.msra.mxu0 0
          %797 = vmatprep.subr.bf16.mxu0 0
          %798 = vmatpush1.bf16.msra.mxu0 0
          %799 = vmatprep.subr.bf16.mxu0 0
          %800 = vmatpush1.bf16.msra.mxu0 0
          %801 = vmatprep.subr.bf16.mxu0 0
          %802 = vmatpush1.bf16.msra.mxu0 0
          %803 = vmatprep.subr.bf16.mxu0 0
          %804 = vmatpush1.bf16.msra.mxu0 0
          %805 = vmatprep.subr.bf16.mxu0 0
          %806 = vmatpush1.bf16.msra.mxu0 0
          %807 = vmatprep.subr.bf16.mxu0 0
          %808 = vmatpush1.bf16.msra.mxu0 0
          %809 = vmatprep.subr.bf16.mxu0 0
          %810 = vmatpush1.bf16.msra.mxu0 0
          %811 = vmatprep.subr.bf16.mxu0 0
          %812 = vmatpush1.bf16.msra.mxu0 0
          %813 = vmatprep.subr.bf16.mxu0 0
          %814 = vmatpush1.bf16.msra.mxu0 0
          %815 = vmatprep.subr.bf16.mxu0 0
          %816 = vmatpush1.bf16.msra.mxu0 0
          %817 = vmatprep.subr.bf16.mxu0 0
          %818 = vmatpush1.bf16.msra.mxu0 0
          %819 = vmatprep.subr.bf16.mxu0 0
          %820 = vmatpush1.bf16.msra.mxu0 0
          %821 = vmatprep.subr.bf16.mxu0 0
          %822 = vmatpush1.bf16.msra.mxu0 0
          %823 = vmatprep.mubr.bf16.mxu0 0
          %824 = vmatmul.mubr.bf16.gmra.mrb[0].mxu0 %v789
          %v825 = vpop.f32.mrb[0].mxu0
          %v826 = vadd.f32 %v786, %v825
          %v827 = vpop.f32.mrb[0].mxu0
          %v828 = vpop.f32.mrb[0].mxu0
          %v829 = vpop.f32.mrb[0].mxu0
          %830 = vdwg.mxu0
          %v831 = vxor.u32 %v826, 2147483648
          %v832 = vmul.f32 %v831, 1.442695
          %v833 = vpow.pop %v832
          %v834 = vadd.f32 %v833, 1.0
          %v835 = vrcp.pop %v834
          %v836 = vmul.f32 1.0, %v835
          %vm837 = vcmask 15360
          %838 = vst.msk [vmem:[%s281] sm:$0xff] %vm837, %v836
        $region56: #{recurrent_dnnc_forward.1} parent=43 // pred_fallthru
          _
        %p839 = scmp.ne.s32.totalorder %s21, 0
        // Predicated region
        $region57: #{recurrent_dnnc_forward.1} parent=43 // pred_check
          %p840 = pneg %p839
        $region58: #{recurrent_dnnc_forward.1} parent=43 // pred_check_branch
          %842 = sbr.rel (%p840) target = $region60
        $region59: #{recurrent_dnnc_forward.1} parent=43 // pred_region
          %v843 = vld [vmem:[%s246] sm:$0xff]
          %v844 = vpack.c.bf16 %v843, %v843
          %v846 = vlaneseq
          %v847 = vshrl.u32 %v846, 7
          %v848 = vsub.s32 0, %v847
          %v849 = vrot.slane %v289, %v848
          %vm851 = vcmask 261120
          %v853 = vsel %vm851, %v844, 0
          %855 = vmatprep.subr.bf16.mxu0 0
          %856 = vmatpush1.bf16.msra.mxu0 %v287
          %857 = vmatprep.subr.bf16.mxu0 0
          %858 = vmatpush1.bf16.msra.mxu0 %v288
          %859 = vmatprep.subr.bf16.mxu0 0
          %860 = vmatpush1.bf16.msra.mxu0 0
          %861 = vmatprep.subr.bf16.mxu0 0
          %862 = vmatpush1.bf16.msra.mxu0 0
          %863 = vmatprep.subr.bf16.mxu0 0
          %864 = vmatpush1.bf16.msra.mxu0 0
          %865 = vmatprep.subr.bf16.mxu0 0
          %866 = vmatpush1.bf16.msra.mxu0 0
          %867 = vmatprep.subr.bf16.mxu0 0
          %868 = vmatpush1.bf16.msra.mxu0 0
          %869 = vmatprep.subr.bf16.mxu0 0
          %870 = vmatpush1.bf16.msra.mxu0 0
          %871 = vmatprep.subr.bf16.mxu0 0
          %872 = vmatpush1.bf16.msra.mxu0 0
          %873 = vmatprep.subr.bf16.mxu0 0
          %874 = vmatpush1.bf16.msra.mxu0 0
          %875 = vmatprep.subr.bf16.mxu0 0
          %876 = vmatpush1.bf16.msra.mxu0 0
          %877 = vmatprep.subr.bf16.mxu0 0
          %878 = vmatpush1.bf16.msra.mxu0 0
          %879 = vmatprep.subr.bf16.mxu0 0
          %880 = vmatpush1.bf16.msra.mxu0 0
          %881 = vmatprep.subr.bf16.mxu0 0
          %882 = vmatpush1.bf16.msra.mxu0 0
          %883 = vmatprep.subr.bf16.mxu0 0
          %884 = vmatpush1.bf16.msra.mxu0 0
          %885 = vmatprep.subr.bf16.mxu0 0
          %886 = vmatpush1.bf16.msra.mxu0 0
          %887 = vmatprep.mubr.bf16.mxu0 0
          %888 = vmatmul.mubr.bf16.gmra.mrb[0].mxu0 %v853
          %v889 = vpop.f32.mrb[0].mxu0
          %v890 = vadd.f32 %v849, %v889
          %v891 = vpop.f32.mrb[0].mxu0
          %v892 = vpop.f32.mrb[0].mxu0
          %v893 = vpop.f32.mrb[0].mxu0
          %894 = vdwg.mxu0
          %v895 = vxor.u32 %v890, 2147483648
          %v896 = vmul.f32 %v895, 1.442695
          %v897 = vpow.pop %v896
          %v898 = vadd.f32 %v897, 1.0
          %v899 = vrcp.pop %v898
          %v900 = vmul.f32 1.0, %v899
          %vm901 = vcmask 15360
          %902 = vst.msk [vmem:[%s281] sm:$0xff] %vm901, %v900
        $region60: #{recurrent_dnnc_forward.1} parent=43 // pred_fallthru
          _
        %p903 = scmp.lt.s32.totalorder %s21, 1
        %s904 = scalar_select %p903, %s21, 1
        %s905 = smul.addr %s904, 8
        %s906 = scalar_lea.vmem %s6, %s905
        // Predicated region
        $region61: #{recurrent_dnnc_forward.1} parent=43 // pred_check
          %p907 = pneg %p170
        $region62: #{recurrent_dnnc_forward.1} parent=43 // pred_check_branch
          %909 = sbr.rel (%p907) target = $region64
        $region63: #{recurrent_dnnc_forward.1} parent=43 // pred_region
          _
        $region64: #{recurrent_dnnc_forward.1} parent=43 // pred_fallthru
          _
      $region44: #{recurrent_dnnc_forward.1} parent=5 // pred_fallthru
        _
      %p910 = scmp.le.s32.totalorder 2, %s16
      // Predicated region
      $region65: #{recurrent_dnnc_forward.1} parent=5 // pred_check
        %p911 = pneg %p910
      $region66: #{recurrent_dnnc_forward.1} parent=5 // pred_check_branch
        %913 = sbr.rel (%p911) target = $region68
      $region67: #{recurrent_dnnc_forward.1} parent=5 // pred_region
        %s914 = ssub.s32 %s16, 2
        // Predicated region
        $region69: #{recurrent_dnnc_forward.1} parent=67 // pred_check
          %p915 = pneg %p176
        $region70: #{recurrent_dnnc_forward.1} parent=67 // pred_check_branch
          %917 = sbr.rel (%p915) target = $region72
        $region71: #{recurrent_dnnc_forward.1} parent=67 // pred_region
          %p918 = scmp.lt.s32.totalorder %s22, 1
          %s919 = scalar_select %p918, %s22, 1
          %s920 = smul.addr %s919, 8
          %s921 = scalar_lea.vmem %s6, %s920
        $region72: #{recurrent_dnnc_forward.1} parent=67 // pred_fallthru
          _
      $region68: #{recurrent_dnnc_forward.1} parent=5 // pred_fallthru
        _
    $region6: #{recurrent_dnnc_forward.1} parent=1 // loop_footer
      %s20 = sadd.s32 1, %s16
    $region7: #{recurrent_dnnc_forward.1} parent=1 // loop_footer_branch
      %15 = sbr.rel target = $region3
    $region8: #{recurrent_dnnc_forward.1} parent=1 // loop_exit
      _
    %922 = vsyncpa [#allocation4], 1
    %s923 = scalar_lea.sflag [#allocation4], 1
    %924 = vsyncpa %s923, 1
    %925 = vsyncpa [#allocation6], 1

</llo_original>
